<compile_context>
chip_gen: v7x
topology: tpu7x:2x2x1
jax: 0.10.0
libtpu: 0.0.40
codegen_flags: <defaults>
</compile_context>

<pallas_src>
import functools
import numpy as np
import jax
import jax.numpy as jnp
from jax import lax
from jax.experimental import pallas as pl
from jax.experimental.pallas import tpu as pltpu

# ----------------------------------------------------------------------------
# Pallas matmul kernels with fused bias + activation (+ residual) epilogue
# ----------------------------------------------------------------------------
TM_MAX, TN_MAX, TK_MAX = 512, 256, 1024


def _round_up(x, m):
    return (x + m - 1) // m * m


def _choose_k_tiling(K):
    """Pick (tk, Kp): minimize padded MXU work + a mild per-K-step penalty."""
    max_tk = min(TK_MAX, _round_up(K, 128))
    best = None
    for tk in range(128, max_tk + 1, 128):
        Kp = _round_up(K, tk)
        cost = Kp + 192 * (Kp // tk)
        if best is None or cost < best[0]:
            best = (cost, tk, Kp)
    return best[1], best[2]


def _apply_act(r, act):
    if act == 'relu':
        return jnp.maximum(r, 0.0)
    if act == 'elu':
        return jnp.where(r > 0.0, r, jnp.exp(jnp.minimum(r, 0.0)) - 1.0)
    if act == 'elu2':   # ELU applied twice (fuses a downstream in-place ELU)
        inner = jnp.exp(jnp.minimum(r, 0.0)) - 1.0
        return jnp.where(r > 0.0, r, jnp.exp(inner) - 1.0)
    return r


def _mm_kernel(a_ref, b_ref, bias_ref, o_ref, acc_ref, *, act):
    @pl.when(pl.program_id(2) == 0)
    def _init():
        acc_ref[...] = jnp.zeros_like(acc_ref)

    acc_ref[...] += jnp.dot(a_ref[...], b_ref[...],
                            preferred_element_type=jnp.float32)

    @pl.when(pl.program_id(2) == pl.num_programs(2) - 1)
    def _done():
        r = acc_ref[...] + bias_ref[...]
        o_ref[...] = _apply_act(r, act).astype(o_ref.dtype)


def _mm_kernel_1k(a_ref, b_ref, bias_ref, o_ref, *, act):
    r = jnp.dot(a_ref[...], b_ref[...],
                preferred_element_type=jnp.float32) + bias_ref[...]
    o_ref[...] = _apply_act(r, act).astype(o_ref.dtype)


def _mm_res_kernel(a_ref, b_ref, bias_ref, res_ref, o_ref, acc_ref, *, act):
    @pl.when(pl.program_id(2) == 0)
    def _init():
        acc_ref[...] = jnp.zeros_like(acc_ref)

    acc_ref[...] += jnp.dot(a_ref[...], b_ref[...],
                            preferred_element_type=jnp.float32)

    @pl.when(pl.program_id(2) == pl.num_programs(2) - 1)
    def _done():
        r = acc_ref[...] + bias_ref[...] + res_ref[...]
        o_ref[...] = _apply_act(r, act).astype(o_ref.dtype)


def _mm_res_kernel_1k(a_ref, b_ref, bias_ref, res_ref, o_ref, *, act):
    r = (jnp.dot(a_ref[...], b_ref[...], preferred_element_type=jnp.float32)
         + bias_ref[...] + res_ref[...])
    o_ref[...] = _apply_act(r, act).astype(o_ref.dtype)


@functools.lru_cache(maxsize=None)
def _matmul_callable(Mp, Kp, Np, tm, tk, tn, act, has_res):
    nk = Kp // tk
    if nk == 1:
        in_specs = [pl.BlockSpec((tm, tk), lambda i, j: (i, 0)),
                    pl.BlockSpec((tk, tn), lambda i, j: (0, j)),
                    pl.BlockSpec((1, tn), lambda i, j: (0, j))]
        if has_res:
            in_specs.append(pl.BlockSpec((tm, tn), lambda i, j: (i, j)))
        kern = functools.partial(_mm_res_kernel_1k if has_res else _mm_kernel_1k,
                                 act=act)
        grid = (Mp // tm, Np // tn)
        out_spec = pl.BlockSpec((tm, tn), lambda i, j: (i, j))
        scratch = []
        sem = ("parallel", "parallel")
    else:
        in_specs = [pl.BlockSpec((tm, tk), lambda i, j, k: (i, k)),
                    pl.BlockSpec((tk, tn), lambda i, j, k: (k, j)),
                    pl.BlockSpec((1, tn), lambda i, j, k: (0, j))]
        if has_res:
            in_specs.append(pl.BlockSpec((tm, tn), lambda i, j, k: (i, j)))
        kern = functools.partial(_mm_res_kernel if has_res else _mm_kernel,
                                 act=act)
        grid = (Mp // tm, Np // tn, nk)
        out_spec = pl.BlockSpec((tm, tn), lambda i, j, k: (i, j))
        scratch = [pltpu.VMEM((tm, tn), jnp.float32)]
        sem = ("parallel", "parallel", "arbitrary")

    fn = pl.pallas_call(
        kern,
        out_shape=jax.ShapeDtypeStruct((Mp, Np), jnp.float32),
        grid_spec=pltpu.PrefetchScalarGridSpec(
            num_scalar_prefetch=0, grid=grid,
            in_specs=in_specs, out_specs=out_spec, scratch_shapes=scratch),
        compiler_params=pltpu.CompilerParams(dimension_semantics=sem),
    )
    return jax.jit(fn)


def matmul_fused(a, p, residual=None):
    """a: [M, K] (K = kh*kw*cin); p: packed conv params (pre-padded weights).

    residual: optional [M, cout] added (post-bias) before the fused activation.
    """
    M, K = a.shape
    Kp, Np, tk, tn = p['Kp'], p['Np'], p['tk'], p['tn']
    tm = min(TM_MAX, _round_up(M, 128))
    Mp = _round_up(M, tm)
    ap = a.astype(jnp.bfloat16)
    if Mp != M or Kp != K:
        ap = jnp.pad(ap, ((0, Mp - M), (0, Kp - K)))
    args = [ap, p['wmat'], p['bias']]
    if residual is not None:
        r = residual.astype(jnp.float32)
        if Mp != M or Np != r.shape[1]:
            r = jnp.pad(r, ((0, Mp - M), (0, Np - r.shape[1])))
        args.append(r)
    out = _matmul_callable(Mp, Kp, Np, tm, tk, tn, p['act'],
                           residual is not None)(*args)
    return out[:M, :p['cout']]


# ----------------------------------------------------------------------------
# Pallas cost-volume correlation kernel (lane-dense 128-channel output)
# ----------------------------------------------------------------------------
MAXD = 4
WIN = 2 * MAXD + 1          # 9 -> 81 displacements
CORR_OUT = 128              # 81 real + 47 zero channels (lane-dense output)


def _corr_kernel(f1_ref, f2_ref, o_ref, *, H, W, C):
    f1 = f1_ref[0]            # [H, W, C]           (C unpadded)
    f2 = f2_ref[0]            # [H + 2d, W + 2d, C]
    inv_c = 1.0 / float(C)
    corrs = []
    for dy in range(WIN):
        for dx in range(WIN):
            prod = f1 * f2[dy:dy + H, dx:dx + W, :]
            corrs.append(jnp.sum(prod, axis=-1) * inv_c)
    res = jnp.stack(corrs, axis=-1)                        # [H, W, 81]
    pad = jnp.zeros((H, W, CORR_OUT - WIN * WIN), jnp.float32)
    o_ref[0] = jnp.concatenate([res, pad], axis=-1)        # [H, W, 128]


@functools.lru_cache(maxsize=None)
def _corr_callable(B, H, W, C):
    kern = functools.partial(_corr_kernel, H=H, W=W, C=C)
    fn = pl.pallas_call(
        kern,
        out_shape=jax.ShapeDtypeStruct((B, H, W, CORR_OUT), jnp.float32),
        grid_spec=pltpu.PrefetchScalarGridSpec(
            num_scalar_prefetch=0,
            grid=(B,),
            in_specs=[
                pl.BlockSpec((1, H, W, C), lambda b: (b, 0, 0, 0)),
                pl.BlockSpec((1, H + 2 * MAXD, W + 2 * MAXD, C),
                             lambda b: (b, 0, 0, 0)),
            ],
            out_specs=pl.BlockSpec((1, H, W, CORR_OUT),
                                   lambda b: (b, 0, 0, 0))),
        compiler_params=pltpu.CompilerParams(
            dimension_semantics=("parallel",)),
    )
    return jax.jit(fn)


def correlation_pallas(f1, f2):
    # f1, f2: [B, H, W, C] NHWC -> [B, H, W, 128] correlation (81 real ch).
    B, H, W, C = f1.shape
    f2p = jnp.pad(f2.astype(jnp.float32),
                  ((0, 0), (MAXD, MAXD), (MAXD, MAXD), (0, 0)))
    return _corr_callable(B, H, W, C)(f1.astype(jnp.float32), f2p)


# ----------------------------------------------------------------------------
# Conv (im2col + fused Pallas matmul) / pooling / resize / warp helpers
# ----------------------------------------------------------------------------
def conv_packed(x, p, stride=1, padding=0, residual=None):
    # x: [B, H, W, Cin] NHWC ; p: packed conv params.
    # residual: optional [B, Ho, Wo, cout] fused into the matmul epilogue.
    # TODO(synk): folding the 3x3 tap offsets into the matmul BlockSpec
    # index_map (instead of materializing im2col patches) would cut HBM traffic
    # further; kept as explicit im2col for robustness at these tiny sizes.
    B, H, W, Cin = x.shape
    kh, kw, cout = p['kh'], p['kw'], p['cout']
    if padding:
        x = jnp.pad(x, ((0, 0), (padding, padding), (padding, padding), (0, 0)))
    Ho = (H + 2 * padding - kh) // stride + 1
    Wo = (W + 2 * padding - kw) // stride + 1
    if kh == 1 and kw == 1:
        patches = x if stride == 1 else x[:, ::stride, ::stride, :]
    else:
        cols = []
        for ky in range(kh):
            for kx in range(kw):
                cols.append(lax.slice(
                    x,
                    (0, ky, kx, 0),
                    (B, ky + (Ho - 1) * stride + 1,
                     kx + (Wo - 1) * stride + 1, Cin),
                    (1, stride, stride, 1)))
        patches = jnp.concatenate(cols, axis=-1)           # [B,Ho,Wo,kh*kw*Cin]
    a = patches.reshape(B * Ho * Wo, kh * kw * Cin)
    res2d = None if residual is None else residual.reshape(B * Ho * Wo, cout)
    out = matmul_fused(a, p, residual=res2d)
    return out.reshape(B, Ho, Wo, cout)


def maxpool_3x3_s2_p1(x):
    return lax.reduce_window(x, -jnp.inf, lax.max,
                             (1, 3, 3, 1), (1, 2, 2, 1),
                             [(0, 0), (1, 1), (1, 1), (0, 0)])


def upsample2x(x):
    # matches nn.Upsample(scale_factor=2, mode='bilinear', align_corners=False)
    B, H, W, C = x.shape
    return jax.image.resize(x, (B, 2 * H, 2 * W, C), method='bilinear')


def _grid_sample_zeros(x, gx, gy):
    # F.grid_sample(mode='bilinear', padding_mode='zeros', align_corners=False)
    B, H, W, C = x.shape
    ix = ((gx + 1.0) * W - 1.0) * 0.5
    iy = ((gy + 1.0) * H - 1.0) * 0.5
    ix0 = jnp.floor(ix)
    iy0 = jnp.floor(iy)
    ix1 = ix0 + 1.0
    iy1 = iy0 + 1.0
    wx1 = ix - ix0
    wx0 = 1.0 - wx1
    wy1 = iy - iy0
    wy0 = 1.0 - wy1
    bidx = jnp.arange(B)[:, None, None]

    def tap(iyf, ixf, wt):
        valid = (ixf >= 0) & (ixf <= W - 1) & (iyf >= 0) & (iyf <= H - 1)
        xi = jnp.clip(ixf, 0, W - 1).astype(jnp.int32)
        yi = jnp.clip(iyf, 0, H - 1).astype(jnp.int32)
        v = x[bidx, yi, xi]                                  # [B,H,W,C]
        return v * (wt * valid.astype(jnp.float32))[..., None]

    return (tap(iy0, ix0, wy0 * wx0) + tap(iy0, ix1, wy0 * wx1)
            + tap(iy1, ix0, wy1 * wx0) + tap(iy1, ix1, wy1 * wx1))


def warp(x, flo):
    # x: [B,H,W,C], flo: [B,H,W,2] with [...,0]=dx, [...,1]=dy
    # TODO(synk): grid_sample-based warp is data-dependent gather; kept in JAX.
    B, H, W, C = x.shape
    xs = jnp.arange(W, dtype=jnp.float32)[None, None, :]
    ys = jnp.arange(H, dtype=jnp.float32)[None, :, None]
    vx = xs + flo[..., 0]
    vy = ys + flo[..., 1]
    gx = 2.0 * vx / (W - 1) - 1.0
    gy = 2.0 * vy / (H - 1) - 1.0
    out = _grid_sample_zeros(x, gx, gy)
    mask = _grid_sample_zeros(jnp.ones_like(x), gx, gy)
    mask = jnp.where(mask < 0.9999, 0.0, 1.0)
    return out * mask


# ----------------------------------------------------------------------------
# Deterministic raw parameter initialization (no checkpoint loading)
# ----------------------------------------------------------------------------
class ParamInit:
    def __init__(self, seed=0):
        self.key = jax.random.PRNGKey(seed)

    def next(self):
        self.key, sub = jax.random.split(self.key)
        return sub

    def conv(self, k, cin, cout, bias=True):
        w = jax.random.normal(self.next(), (k, k, cin, cout), jnp.float32)
        w = w * (1.0 / np.sqrt(k * k * cin))
        b = (jax.random.normal(self.next(), (cout,), jnp.float32) * 0.01
             if bias else None)
        return {'w': w, 'b': b}

    def bn(self, c):
        return {
            'gamma': 1.0 + 0.1 * jax.random.normal(self.next(), (c,), jnp.float32),
            'beta': 0.1 * jax.random.normal(self.next(), (c,), jnp.float32),
            'mean': 0.1 * jax.random.normal(self.next(), (c,), jnp.float32),
            'var': 1.0 + 0.1 * jax.random.uniform(self.next(), (c,), jnp.float32),
        }


def make_resnet18(pi):
    P = {'conv1': pi.conv(7, 3, 64, bias=False), 'bn1': pi.bn(64)}

    def block(cin, cout, stride):
        b = {'conv1': pi.conv(3, cin, cout, bias=False), 'bn1': pi.bn(cout),
             'conv2': pi.conv(3, cout, cout, bias=False), 'bn2': pi.bn(cout),
             'stride': stride}
        if stride != 1 or cin != cout:
            b['down_conv'] = pi.conv(1, cin, cout, bias=False)
            b['down_bn'] = pi.bn(cout)
        return b

    P['layer1'] = [block(64, 64, 1), block(64, 64, 1)]
    P['layer2'] = [block(64, 128, 2), block(128, 128, 1)]
    P['layer3'] = [block(128, 256, 2), block(256, 256, 1)]
    P['layer4'] = [block(256, 512, 2), block(512, 512, 1)]
    return P


CV_IN, CV_OUT = 16, 64


def make_pwc_params(pi):
    P = {}
    P['bottleneck_4'] = pi.conv(1, 512, CV_IN)
    P['corr_4'] = {'conv': pi.conv(1, WIN * WIN, CV_OUT)}
    P['flow_4'] = {'c1': pi.conv(1, 512 + CV_OUT, CV_OUT), 'c2': pi.conv(1, CV_OUT, 2)}
    P['up_4'] = {'conv': pi.conv(3, 512 + CV_OUT, 256), 'bn': pi.bn(256)}
    P['bottleneck_3'] = pi.conv(1, 256, CV_IN)
    P['corr_3'] = {'conv': pi.conv(1, WIN * WIN, CV_OUT)}
    P['flow_3'] = {'c1': pi.conv(1, 256 + 256 + CV_OUT, CV_OUT), 'c2': pi.conv(1, CV_OUT, 2)}
    P['up_3'] = {'conv': pi.conv(3, 256 + 256 + CV_OUT, 128), 'bn': pi.bn(128)}
    P['bottleneck_2'] = pi.conv(1, 128, CV_IN)
    P['corr_2'] = {'conv': pi.conv(1, WIN * WIN, CV_OUT)}
    P['flow_2'] = {'c1': pi.conv(1, 128 + 128 + CV_OUT, CV_OUT), 'c2': pi.conv(1, CV_OUT, 2)}
    P['up_2'] = {'conv': pi.conv(3, 128 + 128 + CV_OUT, 64), 'bn': pi.bn(64)}
    P['bottleneck_1'] = pi.conv(1, 64, CV_IN)
    P['corr_1'] = {'conv': pi.conv(1, WIN * WIN, CV_OUT)}
    P['flow_1'] = {'c1': pi.conv(1, 64 + 64 + CV_OUT, CV_OUT), 'c2': pi.conv(1, CV_OUT, 2)}
    P['up_1'] = {'conv': pi.conv(3, 64 + 64 + CV_OUT, 64), 'bn': pi.bn(64)}
    P['bottleneck_0'] = pi.conv(1, 64, 2)
    P['corr_0'] = {'conv': pi.conv(1, WIN * WIN, 32)}
    # TODO(synk): heads.PredictFlow source not provided; assumed 3x3 conv -> 2 ch.
    P['flow_final'] = pi.conv(3, 64 + 64 + 32, 2)
    return P


# ----------------------------------------------------------------------------
# Parameter packing: fold BN, pre-pad/cast weight matrices, tag fused act
# ----------------------------------------------------------------------------
def pack_conv(w, b, bn=None, act='none', eps=1e-5):
    kh, kw, cin, cout = w.shape
    if bn is not None:
        s = bn['gamma'] / jnp.sqrt(bn['var'] + eps)
        w = w * s[None, None, None, :]
        base = b if b is not None else jnp.zeros((cout,), jnp.float32)
        b = (base - bn['mean']) * s + bn['beta']
    elif b is None:
        b = jnp.zeros((cout,), jnp.float32)
    K, N = kh * kw * cin, cout
    tk, Kp = _choose_k_tiling(K)
    tn = min(TN_MAX, _round_up(N, 128))
    Np = _round_up(N, tn)
    wmat = jnp.zeros((Kp, Np), jnp.bfloat16).at[:K, :N].set(
        w.reshape(K, N).astype(jnp.bfloat16))
    bias = jnp.zeros((1, Np), jnp.float32).at[0, :N].set(b.astype(jnp.float32))
    return {'wmat': wmat, 'bias': bias, 'kh': kh, 'kw': kw, 'cin': cin,
            'cout': cout, 'Kp': Kp, 'Np': Np, 'tk': tk, 'tn': tn, 'act': act}


def pack_corr_conv(c, act='elu'):
    # 1x1 conv over the correlation; input comes pre-padded to 128 channels
    # (extra 47 channels are zeros), so embed the 81-row weight at 128 rows.
    w, b = c['w'], c['b']
    cout = w.shape[-1]
    w128 = jnp.zeros((1, 1, CORR_OUT, cout), jnp.float32)
    w128 = w128.at[:, :, :WIN * WIN, :].set(w)
    return pack_conv(w128, b, bn=None, act=act)


def pack_resnet(P):
    E = {'conv1': pack_conv(P['conv1']['w'], None, bn=P['bn1'], act='none')}

    def pack_block(b):
        # conv2's 'relu' is applied AFTER the fused residual add in the kernel.
        pb = {'stride': b['stride'],
              'conv1': pack_conv(b['conv1']['w'], None, bn=b['bn1'], act='relu'),
              'conv2': pack_conv(b['conv2']['w'], None, bn=b['bn2'], act='relu')}
        if 'down_conv' in b:
            pb['down'] = pack_conv(b['down_conv']['w'], None,
                                   bn=b['down_bn'], act='none')
        return pb

    for name in ('layer1', 'layer2', 'layer3', 'layer4'):
        E[name] = [pack_block(blk) for blk in P[name]]
    return E


def pack_pwc(P):
    # 'elu2' (ELU twice) fuses the downstream in-place ELU of flow_k / up_k
    # onto the producer convs: corr_4..corr_1 and up_4..up_2 feed an ELU'd
    # concat; up_1 and corr_0 feed the level-0 concat which is NOT ELU'd.
    D = {}
    for lvl in ('4', '3', '2', '1'):
        up_act = 'elu2' if lvl != '1' else 'elu'
        D['bottleneck_' + lvl] = pack_conv(P['bottleneck_' + lvl]['w'],
                                           P['bottleneck_' + lvl]['b'])
        D['corr_' + lvl] = pack_corr_conv(P['corr_' + lvl]['conv'], act='elu2')
        D['flow_' + lvl] = {
            'c1': pack_conv(P['flow_' + lvl]['c1']['w'],
                            P['flow_' + lvl]['c1']['b'], act='elu'),
            'c2': pack_conv(P['flow_' + lvl]['c2']['w'],
                            P['flow_' + lvl]['c2']['b'], act='none'),
        }
        D['up_' + lvl] = pack_conv(P['up_' + lvl]['conv']['w'],
                                   P['up_' + lvl]['conv']['b'],
                                   bn=P['up_' + lvl]['bn'], act=up_act)
    D['bottleneck_0'] = pack_conv(P['bottleneck_0']['w'], P['bottleneck_0']['b'])
    D['corr_0'] = pack_corr_conv(P['corr_0']['conv'], act='elu')
    D['flow_final'] = pack_conv(P['flow_final']['w'], P['flow_final']['b'])
    return D


# ----------------------------------------------------------------------------
# Network forward
# ----------------------------------------------------------------------------
def basic_block(x, p):
    s = p['stride']
    out = conv_packed(x, p['conv1'], stride=s, padding=1)       # BN+ReLU fused
    if 'down' in p:
        identity = conv_packed(x, p['down'], stride=s, padding=0)
    else:
        identity = x
    # conv2 + folded BN + residual add + ReLU fused into one matmul epilogue.
    return conv_packed(out, p['conv2'], stride=1, padding=1, residual=identity)


def resnet18_features(x, E):
    x = conv_packed(x, E['conv1'], stride=2, padding=3)   # conv1+bn1 (pre-ReLU)
    f0 = x                                                # hook on bn1 output
    x = jnp.maximum(x, 0.0)
    x = maxpool_3x3_s2_p1(x)
    for b in E['layer1']:
        x = basic_block(x, b)
    f1 = x
    for b in E['layer2']:
        x = basic_block(x, b)
    f2 = x
    for b in E['layer3']:
        x = basic_block(x, b)
    f3 = x
    for b in E['layer4']:
        x = basic_block(x, b)
    f4 = x
    return f0, f1, f2, f3, f4


def bottleneck_pair(p, ft, fs):
    # One batched 1x1-conv matmul for both the target and source features.
    B = ft.shape[0]
    both = conv_packed(jnp.concatenate([ft, fs], axis=0), p)
    return both[:B], both[B:]


def cost_volume(p_corr, f1, f2):
    # TODO(synk): CostVolume module source not provided; implemented as
    # PWC-style normalized correlation over a (2*md+1)^2 window + 1x1 conv + ELU.
    corr = correlation_pallas(f1, f2)        # [B,H,W,128] (81 real channels)
    return conv_packed(corr, p_corr)         # 1x1 conv with fused ELU / ELU^2


def flow_head(p, x_elu):
    # nn.Sequential(ELU(inplace), 1x1 conv, ELU(inplace), 1x1 conv); the first
    # (shared, in-place) ELU is already folded into the inputs of `x_elu`.
    h = conv_packed(x_elu, p['c1'])          # middle ELU fused in epilogue
    return conv_packed(h, p['c2'])


def up_head(p, x_elu):
    x = upsample2x(x_elu)
    return conv_packed(x, p, stride=1, padding=1)   # conv + folded BN + ELU(^2)


def pwc_resnet_forward(images_nchw, enc_packed, dec_packed):
    images = jnp.transpose(images_nchw, (0, 2, 3, 1)).astype(jnp.float32)
    Bsz = images.shape[0]
    image_t = images[..., :3]
    image_s = images[..., 3:]

    # Single batched encoder pass over both images (batch 2B), then split.
    feats = resnet18_features(jnp.concatenate([image_t, image_s], axis=0),
                              enc_packed)
    (ft0, fs0), (ft1, fs1), (ft2, fs2), (ft3, fs3), (ft4, fs4) = [
        (f[:Bsz], f[Bsz:]) for f in feats]
    P = dec_packed

    # Note: the in-place nn.ELU at the head of flow_k (shared with up_k) is an
    # identity on the post-ReLU encoder features ft_k, and has been fused
    # ('elu2') into the convs producing up_{k+1} and the cost volumes, so each
    # concatenated `x` below already equals ELU(original concat).

    # ---- level 4 ----
    bt4, bs4 = bottleneck_pair(P['bottleneck_4'], ft4, fs4)
    cv = cost_volume(P['corr_4'], bt4, bs4)
    x = jnp.concatenate([ft4, cv], axis=-1)
    flow_4 = flow_head(P['flow_4'], x) * 4.0
    up_4 = up_head(P['up_4'], x)
    up_flow_4 = upsample2x(flow_4 * 2.0)

    # ---- level 3 ----
    bt3, bs3 = bottleneck_pair(P['bottleneck_3'], ft3, fs3)
    warped = warp(bs3, up_flow_4)
    cv = cost_volume(P['corr_3'], bt3, warped)
    x = jnp.concatenate([up_4, ft3, cv], axis=-1)
    flow_3 = up_flow_4 + flow_head(P['flow_3'], x) * 0.1
    up_3 = up_head(P['up_3'], x)
    up_flow_3 = upsample2x(flow_3 * 2.0)

    # ---- level 2 ----
    bt2, bs2 = bottleneck_pair(P['bottleneck_2'], ft2, fs2)
    warped = warp(bs2, up_flow_3)
    cv = cost_volume(P['corr_2'], bt2, warped)
    x = jnp.concatenate([up_3, ft2, cv], axis=-1)
    flow_2 = up_flow_3 + flow_head(P['flow_2'], x) * 0.1
    up_2 = up_head(P['up_2'], x)
    up_flow_2 = upsample2x(flow_2 * 2.0)

    # ---- level 1 ----
    bt1, bs1 = bottleneck_pair(P['bottleneck_1'], ft1, fs1)
    warped = warp(bs1, up_flow_2)
    cv = cost_volume(P['corr_1'], bt1, warped)
    x = jnp.concatenate([up_2, ft1, cv], axis=-1)
    flow_1 = up_flow_2 + flow_head(P['flow_1'], x) * 0.1
    up_1 = up_head(P['up_1'], x)
    up_flow_1 = upsample2x(flow_1 * 2.0)

    # ---- level 0 (no shared ELU here: up_1 / corr_0 keep single ELU) ----
    bt0, bs0 = bottleneck_pair(P['bottleneck_0'], ft0, fs0)
    warped = warp(bs0, up_flow_1)
    cv = cost_volume(P['corr_0'], bt0, warped)
    x = jnp.concatenate([up_1, ft0, cv], axis=-1)
    x = upsample2x(x)
    flow_final = (upsample2x(up_flow_1 * 2.0)
                  + conv_packed(x, P['flow_final'], padding=1) * 0.1)

    to_nchw = lambda t: jnp.transpose(t, (0, 3, 1, 2))
    flows = [to_nchw(f) for f in (flow_final, flow_1, flow_2, flow_3, flow_4)]
    return flows, None


# ----------------------------------------------------------------------------
if __name__ == "__main__":
    B, H, W = 2, 64, 64
    key = jax.random.PRNGKey(0)
    images = jax.random.normal(key, (B, 6, H, W), jnp.float32)

    pi = ParamInit(seed=0)
    enc_packed = pack_resnet(make_resnet18(pi))
    dec_packed = pack_pwc(make_pwc_params(pi))

    flows, _ = pwc_resnet_forward(images, enc_packed, dec_packed)
    flows = [jax.block_until_ready(f) for f in flows]

    assert flows[0].shape == (B, 2, H, W)
    assert flows[1].shape == (B, 2, H // 4, W // 4)
    assert flows[2].shape == (B, 2, H // 8, W // 8)
    assert flows[3].shape == (B, 2, H // 16, W // 16)
    assert flows[4].shape == (B, 2, H // 32, W // 32)
    print("KERNEL_OK")
</pallas_src>

<mosaic_0001>
module attributes {stable_mosaic.version = 11 : i64} {
  func.func @_mm_kernel_1k(%arg0: i32, %arg1: i32, %arg2: memref<512x256xbf16, #tpu.memory_space<vmem>>, %arg3: memref<256x128xbf16, #tpu.memory_space<vmem>>, %arg4: memref<1x128xf32, #tpu.memory_space<vmem>>, %arg5: memref<512x128xf32, #tpu.memory_space<vmem>>) attributes {dimension_semantics = [#tpu.dimension_semantics<parallel>, #tpu.dimension_semantics<parallel>], iteration_bounds = array<i64: 8, 1>, scalar_prefetch = 0 : i64, scratch_operands = 0 : i64, tpu.core_type = #tpu.core_type<tc>, window_params = [{transform_indices = @transform_0, window_bounds = array<i64: 512, 256>}, {transform_indices = @transform_1, window_bounds = array<i64: 256, 128>}, {transform_indices = @transform_2, window_bounds = array<i64: 1, 128>}, {transform_indices = @transform_3, window_bounds = array<i64: 512, 128>}]} {
    %c0 = arith.constant 0 : index
    %c0_0 = arith.constant 0 : index
    %0 = vector.load %arg2[%c0, %c0_0] : memref<512x256xbf16, #tpu.memory_space<vmem>>, vector<512x256xbf16>
    %c0_1 = arith.constant 0 : index
    %c0_2 = arith.constant 0 : index
    %1 = vector.load %arg3[%c0_1, %c0_2] : memref<256x128xbf16, #tpu.memory_space<vmem>>, vector<256x128xbf16>
    %cst = arith.constant dense<0.000000e+00> : vector<512x128xf32>
    %2 = tpu.matmul %0, %1, %cst {dimension_numbers = #tpu.dot_dimension_numbers<[1], [0], [0], [1], [0, 0, 1, 1], [], []>} : vector<512x256xbf16>, vector<256x128xbf16>, vector<512x128xf32> -> vector<512x128xf32>
    %c0_3 = arith.constant 0 : index
    %c0_4 = arith.constant 0 : index
    %3 = vector.load %arg4[%c0_3, %c0_4] : memref<1x128xf32, #tpu.memory_space<vmem>>, vector<1x128xf32>
    %4 = vector.broadcast %3 : vector<1x128xf32> to vector<512x128xf32>
    %5 = arith.addf %2, %4 : vector<512x128xf32>
    %c0_5 = arith.constant 0 : index
    %c0_6 = arith.constant 0 : index
    %6 = vector.load %arg5[%c0_5, %c0_6] : memref<512x128xf32, #tpu.memory_space<vmem>>, vector<512x128xf32>
    tpu.vector_store %arg5[%c0_5, %c0_6], %5 {strides = array<i32>} : memref<512x128xf32, #tpu.memory_space<vmem>>, vector<512x128xf32>,
    return
  }
  func.func @transform_0(%arg0: i32, %arg1: i32) -> (i32, i32) {
    %c0_i32 = arith.constant 0 : i32
    %c0_i32_0 = arith.constant 0 : i32
    return %arg0, %c0_i32 : i32, i32
  }
  func.func @transform_1(%arg0: i32, %arg1: i32) -> (i32, i32) {
    %c0_i32 = arith.constant 0 : i32
    %c0_i32_0 = arith.constant 0 : i32
    return %c0_i32, %arg1 : i32, i32
  }
  func.func @transform_2(%arg0: i32, %arg1: i32) -> (i32, i32) {
    %c0_i32 = arith.constant 0 : i32
    %c0_i32_0 = arith.constant 0 : i32
    return %c0_i32, %arg1 : i32, i32
  }
  func.func @transform_3(%arg0: i32, %arg1: i32) -> (i32, i32) {
    %c0_i32 = arith.constant 0 : i32
    return %arg0, %arg1 : i32, i32
  }
}

</mosaic_0001>

<llo_original>
// kernel: tpu_custom_call.1
$region0: #{tpu_custom_call.1}
  #allocation0 [shape = 'u32[]', space=smem, size = 0x4, offset = 0x4, fixed_abs, tag = 'smem constant byte address 0x4 - core index']
  #allocation1 [shape = 'u32[144,128]{1,0:T(1,128)}', space=vmem, size = 0x12000, scoped, tag = 'internal scratch']
  %s0 = inlined_call_operand.hbm [shape: bf16[4096,256], index: 0, kind: input, shape index: {}]
  %s1 = inlined_call_operand.hbm [shape: bf16[256,128], index: 1, kind: input, shape index: {}]
  %s2 = inlined_call_operand.hbm [shape: f32[1,128], index: 2, kind: input, shape index: {}]
  %s3 = inlined_call_operand.hbm [shape: f32[4096,128], index: 3, kind: output, shape index: {}]
  %s4 = sld [smem:[#allocation0]]
  $region57: #{tpu_custom_call.1} parent=0
    _
  %s6 = ssub.s32 1, %s4
  %s7 = scalar_select 0, %s6, %s4
  $region1: #{tpu_custom_call.1} parent=0
    #allocation2 [shape = 'u8[524288]{0}', space=vmem, size = 0x80000, scoped, tag = 'input window, operand 0']
    #allocation3 [shape = 's32[2]{0}', space=sflag, size = 0x8, scoped, tag = 'scoped memory for tpu_custom_call.1']
    #allocation4 [shape = 's32[2]{0}', space=sflag, size = 0x8, scoped, tag = 'scoped memory for tpu_custom_call.1']
    #allocation5 [shape = 'u8[65536]{0}', space=vmem, size = 0x10000, scoped, tag = 'input window, operand 1, single buffered']
    #allocation6 [shape = 's32[1]{0}', space=sflag, size = 0x4, scoped, tag = 'scoped memory for tpu_custom_call.1']
    #allocation7 [shape = 'u8[512]{0}', space=vmem, size = 0x400, scoped, tag = 'input window, operand 2, single buffered']
    #allocation8 [shape = 'u8[524288]{0}', space=vmem, size = 0x80000, scoped, tag = 'output window, operand 0']
    %8 = vsyncpa [#allocation3], 0
    %s9 = scalar_lea.sflag [#allocation3], 1
    %10 = vsyncpa %s9, 0
    %11 = vsyncpa [#allocation6], 0
    %12 = vsyncpa [#allocation4], 0
    %s13 = scalar_lea.sflag [#allocation4], 1
    %14 = vsyncpa %s13, 0
    loop: start=0, step=1, limit=10
    $region2: #{tpu_custom_call.1} parent=1 // loop_pre_header
      _
    $region3: #{tpu_custom_call.1} parent=1 // loop_header
      %s16 = sphi 0, %s20
      %p17 = scmp.ge.s32.totalorder %s16, 10
      %s23 = sphi 0, %s35
      %s24 = sphi 0, %s31
      %s25 = sphi 0, %s23
      %s26 = sphi 0, %s24
      %s27 = sphi 0, %s25
      %s28 = sphi 0, %s26
      %s38 = sphi 0, %s40
      %s41 = sphi 0, %s38
      %s42 = sphi 0, %s41
      %s58 = sphi 0, %s42
      %s64 = sphi 0, %s66
      %s67 = sphi 0, %s64
      %s68 = sphi 0, %s67
      %s84 = sphi 0, %s68
      %s90 = sphi 0, %s92
      %s93 = sphi 0, %s90
      %s94 = sphi 0, %s93
      %s110 = sphi 0, %s94
      %s118 = sphi 0, %s120
      %s121 = sphi 0, %s118
      %s122 = sphi 0, %s121
      %s138 = sphi 0, %s122
    $region4: #{tpu_custom_call.1} parent=1 // loop_header_branch
      %19 = sbr.rel (%p17) target = $region8
    $region5: #{tpu_custom_call.1} parent=1 // loop_body
      %s21 = ssub.s32 %s16, 1
      %s22 = ssub.s32 %s16, 2
      %s29 = sadd.s32 1, %s24
      %p30 = scmp.ge.s32.totalorder %s29, 1
      %s31 = scalar_select %p30, 0, %s29
      %s32 = sadd.s32 1, %s23
      %s33 = scalar_select %p30, %s32, %s23
      %p34 = scmp.ge.s32.totalorder %s33, 8
      %s35 = scalar_select %p34, 0, %s33
      %s36 = ssub.s32 %s23, %s35
      %p37 = scmp.eq.s32.totalorder %s36, 0
      %s39 = sadd.s32 %s38, 1
      %s40 = scalar_select %p37, %s38, %s39
      %p43 = pneg %p37
      %p44 = scmp.eq.s32.totalorder %s16, 7
      %p45 = por %p43, %p44
      %p46 = scmp.ne.s32.totalorder %s38, %s41
      %p47 = scmp.eq.s32.totalorder %s16, 0
      %p48 = por %p46, %p47
      %p49 = scmp.ne.s32.totalorder %s38, %s41
      %p50 = scmp.eq.s32.totalorder %s21, 7
      %p51 = por %p49, %p50
      %p52 = scmp.ne.s32.totalorder %s41, %s42
      %p53 = scmp.eq.s32.totalorder %s21, 0
      %p54 = por %p52, %p53
      %p55 = scmp.ne.s32.totalorder %s41, %s42
      %p56 = scmp.eq.s32.totalorder %s22, 7
      %p57 = por %p55, %p56
      %p59 = scmp.ne.s32.totalorder %s42, %s58
      %p60 = scmp.eq.s32.totalorder %s22, 0
      %p61 = por %p59, %p60
      %s62 = ssub.s32 %s24, %s31
      %p63 = scmp.eq.s32.totalorder %s62, 0
      %s65 = sadd.s32 %s64, 1
      %s66 = scalar_select %p63, %s64, %s65
      %p69 = pneg %p63
      %p70 = scmp.eq.s32.totalorder %s16, 7
      %p71 = por %p69, %p70
      %p72 = scmp.ne.s32.totalorder %s64, %s67
      %p73 = scmp.eq.s32.totalorder %s16, 0
      %p74 = por %p72, %p73
      %p75 = scmp.ne.s32.totalorder %s64, %s67
      %p76 = scmp.eq.s32.totalorder %s21, 7
      %p77 = por %p75, %p76
      %p78 = scmp.ne.s32.totalorder %s67, %s68
      %p79 = scmp.eq.s32.totalorder %s21, 0
      %p80 = por %p78, %p79
      %p81 = scmp.ne.s32.totalorder %s67, %s68
      %p82 = scmp.eq.s32.totalorder %s22, 7
      %p83 = por %p81, %p82
      %p85 = scmp.ne.s32.totalorder %s68, %s84
      %p86 = scmp.eq.s32.totalorder %s22, 0
      %p87 = por %p85, %p86
      %s88 = ssub.s32 %s24, %s31
      %p89 = scmp.eq.s32.totalorder %s88, 0
      %s91 = sadd.s32 %s90, 1
      %s92 = scalar_select %p89, %s90, %s91
      %p95 = pneg %p89
      %p96 = scmp.eq.s32.totalorder %s16, 7
      %p97 = por %p95, %p96
      %p98 = scmp.ne.s32.totalorder %s90, %s93
      %p99 = scmp.eq.s32.totalorder %s16, 0
      %p100 = por %p98, %p99
      %p101 = scmp.ne.s32.totalorder %s90, %s93
      %p102 = scmp.eq.s32.totalorder %s21, 7
      %p103 = por %p101, %p102
      %p104 = scmp.ne.s32.totalorder %s93, %s94
      %p105 = scmp.eq.s32.totalorder %s21, 0
      %p106 = por %p104, %p105
      %p107 = scmp.ne.s32.totalorder %s93, %s94
      %p108 = scmp.eq.s32.totalorder %s22, 7
      %p109 = por %p107, %p108
      %p111 = scmp.ne.s32.totalorder %s94, %s110
      %p112 = scmp.eq.s32.totalorder %s22, 0
      %p113 = por %p111, %p112
      %s114 = ssub.s32 %s23, %s35
      %s115 = ssub.s32 %s24, %s31
      %s116 = sor.u32 %s114, %s115
      %p117 = scmp.eq.s32.totalorder %s116, 0
      %s119 = sadd.s32 %s118, 1
      %s120 = scalar_select %p117, %s118, %s119
      %p123 = pneg %p117
      %p124 = scmp.eq.s32.totalorder %s16, 7
      %p125 = por %p123, %p124
      %p126 = scmp.ne.s32.totalorder %s118, %s121
      %p127 = scmp.eq.s32.totalorder %s16, 0
      %p128 = por %p126, %p127
      %p129 = scmp.ne.s32.totalorder %s118, %s121
      %p130 = scmp.eq.s32.totalorder %s21, 7
      %p131 = por %p129, %p130
      %p132 = scmp.ne.s32.totalorder %s121, %s122
      %p133 = scmp.eq.s32.totalorder %s21, 0
      %p134 = por %p132, %p133
      %p135 = scmp.ne.s32.totalorder %s121, %s122
      %p136 = scmp.eq.s32.totalorder %s22, 7
      %p137 = por %p135, %p136
      %p139 = scmp.ne.s32.totalorder %s122, %s138
      %p140 = scmp.eq.s32.totalorder %s22, 0
      %p141 = por %p139, %p140
      %p142 = scmp.le.s32.totalorder 1, %s16
      %p143 = scmp.lt.s32.totalorder %s16, 9
      %p144 = pnand %p142, %p143
      %p145 = pneg %p144
      // Predicated region
      $region9: #{tpu_custom_call.1} parent=5 // pred_check
        _
      $region10: #{tpu_custom_call.1} parent=5 // pred_check_branch
        %147 = sbr.rel (%p144) target = $region12
      $region11: #{tpu_custom_call.1} parent=5 // pred_region
        %s148 = ssub.s32 %s16, 1
        // Predicated region
        $region13: #{tpu_custom_call.1} parent=11 // pred_check
          %p149 = pneg %p80
        $region14: #{tpu_custom_call.1} parent=11 // pred_check_branch
          %151 = sbr.rel (%p149) target = $region16
        $region15: #{tpu_custom_call.1} parent=11 // pred_region
          %s153 = ssub.s32 2048, 2048
          %154 = vsyncadd [#allocation6], %s153
          %s155 = smul.addr %s26, 64
          %s156 = scalar_lea.hbm %s1, %s155
          %s157 = sshll.u32 [#allocation5], 4
          %s158 = int_to_ptr.vmem [resolvable:$true] %s157
          %163 = dma.hbm_to_vmem [thread:$0]  %s156, 2048, %s158, [#allocation6], 64, 64, 4
        $region16: #{tpu_custom_call.1} parent=11 // pred_fallthru
          _
        // Predicated region
        $region17: #{tpu_custom_call.1} parent=11 // pred_check
          %p164 = pneg %p106
        $region18: #{tpu_custom_call.1} parent=11 // pred_check_branch
          %166 = sbr.rel (%p164) target = $region20
        $region19: #{tpu_custom_call.1} parent=11 // pred_region
          %s168 = ssub.s32 16, 16
          %169 = vsyncadd [#allocation6], %s168
          %s170 = smul.addr %s26, 16
          %s171 = scalar_lea.hbm %s2, %s170
          %s173 = sshll.u32 [#allocation7], 4
          %s174 = int_to_ptr.vmem [resolvable:$true] %s173
          %176 = dma.hbm_to_vmem [thread:$0]  %s171, 16, %s174, [#allocation6]
        $region20: #{tpu_custom_call.1} parent=11 // pred_fallthru
          _
      $region12: #{tpu_custom_call.1} parent=5 // pred_fallthru
        _
      %p177 = scmp.lt.s32.totalorder %s16, 8
      // Predicated region
      $region21: #{tpu_custom_call.1} parent=5 // pred_check
        %p178 = pneg %p177
      $region22: #{tpu_custom_call.1} parent=5 // pred_check_branch
        %180 = sbr.rel (%p178) target = $region24
      $region23: #{tpu_custom_call.1} parent=5 // pred_region
        // Predicated region
        $region25: #{tpu_custom_call.1} parent=23 // pred_check
          %p181 = pneg %p48
        $region26: #{tpu_custom_call.1} parent=23 // pred_check_branch
          %183 = sbr.rel (%p181) target = $region28
        $region27: #{tpu_custom_call.1} parent=23 // pred_region
          %s184 = sand.u32 %s38, 1
          %s185 = scalar_lea.sflag [#allocation3], %s184
          %s186 = sand.u32 %s38, 1
          %s187 = smul.addr %s186, 512
          %s188 = scalar_lea.vmem [#allocation2], %s187
          %s189 = smul.u32 64, %s23
          %s191 = ssub.s32 8192, 8192
          %192 = vsyncadd %s185, %s191
          %s193 = smul.addr %s189, 2
          %s194 = smul.addr %s193, 64
          %s195 = scalar_lea.hbm %s0, %s194
          %s196 = sshll.u32 %s188, 4
          %s197 = int_to_ptr.vmem [resolvable:$true] %s196
          %202 = dma.hbm_to_vmem [thread:$0]  %s195, 8192, %s197, %s185, 128, 128, 8
        $region28: #{tpu_custom_call.1} parent=23 // pred_fallthru
          _
      $region24: #{tpu_custom_call.1} parent=5 // pred_fallthru
        _
      %p203 = scmp.le.s32.totalorder 1, %s16
      %p204 = scmp.lt.s32.totalorder %s16, 9
      %p205 = pnand %p203, %p204
      %p206 = pneg %p205
      // Predicated region
      $region29: #{tpu_custom_call.1} parent=5 // pred_check
        _
      $region30: #{tpu_custom_call.1} parent=5 // pred_check_branch
        %208 = sbr.rel (%p205) target = $region32
      $region31: #{tpu_custom_call.1} parent=5 // pred_region
        %s209 = ssub.s32 %s16, 1
        %s210 = sand.u32 %s41, 1
        %s211 = scalar_lea.sflag [#allocation3], %s210
        %s212 = sand.u32 %s41, 1
        %s213 = smul.addr %s212, 512
        %s214 = scalar_lea.vmem [#allocation2], %s213
        // Predicated region
        $region33: #{tpu_custom_call.1} parent=31 // pred_check
          %p215 = pneg %p54
        $region34: #{tpu_custom_call.1} parent=31 // pred_check_branch
          %217 = sbr.rel (%p215) target = $region36
        $region35: #{tpu_custom_call.1} parent=31 // pred_region
          %218 = dma.done %s211, 8192
        $region36: #{tpu_custom_call.1} parent=31 // pred_fallthru
          _
        // Predicated region
        $region37: #{tpu_custom_call.1} parent=31 // pred_check
          %p219 = pneg %p80
        $region38: #{tpu_custom_call.1} parent=31 // pred_check_branch
          %221 = sbr.rel (%p219) target = $region40
        $region39: #{tpu_custom_call.1} parent=31 // pred_region
          %222 = dma.done [#allocation6], 2048
        $region40: #{tpu_custom_call.1} parent=31 // pred_fallthru
          _
        // Predicated region
        $region41: #{tpu_custom_call.1} parent=31 // pred_check
          %p223 = pneg %p106
        $region42: #{tpu_custom_call.1} parent=31 // pred_check_branch
          %225 = sbr.rel (%p223) target = $region44
        $region43: #{tpu_custom_call.1} parent=31 // pred_region
          %226 = dma.done [#allocation6], 16
        $region44: #{tpu_custom_call.1} parent=31 // pred_fallthru
          _
        %s227 = sand.u32 %s41, 1
        %s228 = scalar_lea.sflag [#allocation3], %s227
        %s229 = sand.u32 %s41, 1
        %s230 = smul.addr %s229, 512
        %s231 = scalar_lea.vmem [#allocation2], %s230
        %p232 = pneg %p54
        %p233 = pneg %p51
        %p234 = pneg %p80
        %p235 = pneg %p77
        %p236 = pneg %p106
        %p237 = pneg %p103
        %p238 = pneg %p134
        %p239 = pneg %p131
        %s240 = sand.u32 %s121, 1
        %s241 = scalar_lea.sflag [#allocation4], %s240
        %s242 = sand.u32 %s121, 1
        %s243 = smul.addr %s242, 512
        %s244 = scalar_lea.vmem [#allocation8], %s243
        %s245 = smul.u32 64, %s25
        %s246 = smul.u32 64, %s25
        %v248 = vld [vmem:[%s214] sm:$0xff]
        %v249 = vld [vmem:[%s214 + $0x8] sm:$0xff]
        %v250 = vld [vmem:[%s214 + $0x10] sm:$0xff]
        %v251 = vld [vmem:[%s214 + $0x18] sm:$0xff]
        %v252 = vld [vmem:[%s214 + $0x20] sm:$0xff]
        %v253 = vld [vmem:[%s214 + $0x28] sm:$0xff]
        %v254 = vld [vmem:[%s214 + $0x30] sm:$0xff]
        %v255 = vld [vmem:[%s214 + $0x38] sm:$0xff]
        %v256 = vld [vmem:[%s214 + $0x40] sm:$0xff]
        %v257 = vld [vmem:[%s214 + $0x48] sm:$0xff]
        %v258 = vld [vmem:[%s214 + $0x50] sm:$0xff]
        %v259 = vld [vmem:[%s214 + $0x58] sm:$0xff]
        %v260 = vld [vmem:[%s214 + $0x60] sm:$0xff]
        %v261 = vld [vmem:[%s214 + $0x68] sm:$0xff]
        %v262 = vld [vmem:[%s214 + $0x70] sm:$0xff]
        %v263 = vld [vmem:[%s214 + $0x78] sm:$0xff]
        %v264 = vld [vmem:[%s214 + $0x80] sm:$0xff]
        %v265 = vld [vmem:[%s214 + $0x88] sm:$0xff]
        %v266 = vld [vmem:[%s214 + $0x90] sm:$0xff]
        %v267 = vld [vmem:[%s214 + $0x98] sm:$0xff]
        %v268 = vld [vmem:[%s214 + $0xa0] sm:$0xff]
        %v269 = vld [vmem:[%s214 + $0xa8] sm:$0xff]
        %v270 = vld [vmem:[%s214 + $0xb0] sm:$0xff]
        %v271 = vld [vmem:[%s214 + $0xb8] sm:$0xff]
        %v272 = vld [vmem:[%s214 + $0xc0] sm:$0xff]
        %v273 = vld [vmem:[%s214 + $0xc8] sm:$0xff]
        %v274 = vld [vmem:[%s214 + $0xd0] sm:$0xff]
        %v275 = vld [vmem:[%s214 + $0xd8] sm:$0xff]
        %v276 = vld [vmem:[%s214 + $0xe0] sm:$0xff]
        %v277 = vld [vmem:[%s214 + $0xe8] sm:$0xff]
        %v278 = vld [vmem:[%s214 + $0xf0] sm:$0xff]
        %v279 = vld [vmem:[%s214 + $0xf8] sm:$0xff]
        %v280 = vld [vmem:[%s214 + $0x100] sm:$0xff]
        %v281 = vld [vmem:[%s214 + $0x108] sm:$0xff]
        %v282 = vld [vmem:[%s214 + $0x110] sm:$0xff]
        %v283 = vld [vmem:[%s214 + $0x118] sm:$0xff]
        %v284 = vld [vmem:[%s214 + $0x120] sm:$0xff]
        %v285 = vld [vmem:[%s214 + $0x128] sm:$0xff]
        %v286 = vld [vmem:[%s214 + $0x130] sm:$0xff]
        %v287 = vld [vmem:[%s214 + $0x138] sm:$0xff]
        %v288 = vld [vmem:[%s214 + $0x140] sm:$0xff]
        %v289 = vld [vmem:[%s214 + $0x148] sm:$0xff]
        %v290 = vld [vmem:[%s214 + $0x150] sm:$0xff]
        %v291 = vld [vmem:[%s214 + $0x158] sm:$0xff]
        %v292 = vld [vmem:[%s214 + $0x160] sm:$0xff]
        %v293 = vld [vmem:[%s214 + $0x168] sm:$0xff]
        %v294 = vld [vmem:[%s214 + $0x170] sm:$0xff]
        %v295 = vld [vmem:[%s214 + $0x178] sm:$0xff]
        %v296 = vld [vmem:[%s214 + $0x180] sm:$0xff]
        %v297 = vld [vmem:[%s214 + $0x188] sm:$0xff]
        %v298 = vld [vmem:[%s214 + $0x190] sm:$0xff]
        %v299 = vld [vmem:[%s214 + $0x198] sm:$0xff]
        %v300 = vld [vmem:[%s214 + $0x1a0] sm:$0xff]
        %v301 = vld [vmem:[%s214 + $0x1a8] sm:$0xff]
        %v302 = vld [vmem:[%s214 + $0x1b0] sm:$0xff]
        %v303 = vld [vmem:[%s214 + $0x1b8] sm:$0xff]
        %v304 = vld [vmem:[%s214 + $0x1c0] sm:$0xff]
        %v305 = vld [vmem:[%s214 + $0x1c8] sm:$0xff]
        %v306 = vld [vmem:[%s214 + $0x1d0] sm:$0xff]
        %v307 = vld [vmem:[%s214 + $0x1d8] sm:$0xff]
        %v308 = vld [vmem:[%s214 + $0x1e0] sm:$0xff]
        %v309 = vld [vmem:[%s214 + $0x1e8] sm:$0xff]
        %v310 = vld [vmem:[%s214 + $0x1f0] sm:$0xff]
        %v311 = vld [vmem:[%s214 + $0x1f8] sm:$0xff]
        %v312 = vld [vmem:[#allocation5] sm:$0xf]
        %v313 = vld [vmem:[#allocation5 + $0x4] sm:$0xf]
        %v314 = vld [vmem:[#allocation5 + $0x8] sm:$0xf]
        %v315 = vld [vmem:[#allocation5 + $0xc] sm:$0xf]
        %v316 = vld [vmem:[#allocation5 + $0x10] sm:$0xf]
        %v317 = vld [vmem:[#allocation5 + $0x14] sm:$0xf]
        %v318 = vld [vmem:[#allocation5 + $0x18] sm:$0xf]
        %v319 = vld [vmem:[#allocation5 + $0x1c] sm:$0xf]
        %v320 = vld [vmem:[#allocation5 + $0x20] sm:$0xf]
        %v321 = vld [vmem:[#allocation5 + $0x24] sm:$0xf]
        %v322 = vld [vmem:[#allocation5 + $0x28] sm:$0xf]
        %v323 = vld [vmem:[#allocation5 + $0x2c] sm:$0xf]
        %v324 = vld [vmem:[#allocation5 + $0x30] sm:$0xf]
        %v325 = vld [vmem:[#allocation5 + $0x34] sm:$0xf]
        %v326 = vld [vmem:[#allocation5 + $0x38] sm:$0xf]
        %v327 = vld [vmem:[#allocation5 + $0x3c] sm:$0xf]
        %v328 = vld [vmem:[#allocation5 + $0x40] sm:$0xf]
        %v329 = vld [vmem:[#allocation5 + $0x44] sm:$0xf]
        %v330 = vld [vmem:[#allocation5 + $0x48] sm:$0xf]
        %v331 = vld [vmem:[#allocation5 + $0x4c] sm:$0xf]
        %v332 = vld [vmem:[#allocation5 + $0x50] sm:$0xf]
        %v333 = vld [vmem:[#allocation5 + $0x54] sm:$0xf]
        %v334 = vld [vmem:[#allocation5 + $0x58] sm:$0xf]
        %v335 = vld [vmem:[#allocation5 + $0x5c] sm:$0xf]
        %v336 = vld [vmem:[#allocation5 + $0x60] sm:$0xf]
        %v337 = vld [vmem:[#allocation5 + $0x64] sm:$0xf]
        %v338 = vld [vmem:[#allocation5 + $0x68] sm:$0xf]
        %v339 = vld [vmem:[#allocation5 + $0x6c] sm:$0xf]
        %v340 = vld [vmem:[#allocation5 + $0x70] sm:$0xf]
        %v341 = vld [vmem:[#allocation5 + $0x74] sm:$0xf]
        %v342 = vld [vmem:[#allocation5 + $0x78] sm:$0xf]
        %v343 = vld [vmem:[#allocation5 + $0x7c] sm:$0xf]
        %v344 = vld [vmem:[#allocation7] sm:$0x1]
        %v346 = vlaneseq
        %v347 = vshrl.u32 %v346, 7
        %v348 = vsub.s32 0, %v347
        %v349 = vrot.slane %v344, %v348
        %v415 = vunpack.c.l.b16 %v248
        %v416 = vunpack.c.h.b16 %v248
        %v417 = vunpack.c.l.b16 %v249
        %v418 = vunpack.c.h.b16 %v249
        %v419 = vunpack.c.l.b16 %v250
        %v420 = vunpack.c.h.b16 %v250
        %v421 = vunpack.c.l.b16 %v251
        %v422 = vunpack.c.h.b16 %v251
        %v423 = vunpack.c.l.b16 %v252
        %v424 = vunpack.c.h.b16 %v252
        %v425 = vunpack.c.l.b16 %v253
        %v426 = vunpack.c.h.b16 %v253
        %v427 = vunpack.c.l.b16 %v254
        %v428 = vunpack.c.h.b16 %v254
        %v429 = vunpack.c.l.b16 %v255
        %v430 = vunpack.c.h.b16 %v255
        %v431 = vunpack.c.l.b16 %v256
        %v432 = vunpack.c.h.b16 %v256
        %v433 = vunpack.c.l.b16 %v257
        %v434 = vunpack.c.h.b16 %v257
        %v435 = vunpack.c.l.b16 %v258
        %v436 = vunpack.c.h.b16 %v258
        %v437 = vunpack.c.l.b16 %v259
        %v438 = vunpack.c.h.b16 %v259
        %v439 = vunpack.c.l.b16 %v260
        %v440 = vunpack.c.h.b16 %v260
        %v441 = vunpack.c.l.b16 %v261
        %v442 = vunpack.c.h.b16 %v261
        %v443 = vunpack.c.l.b16 %v262
        %v444 = vunpack.c.h.b16 %v262
        %v445 = vunpack.c.l.b16 %v263
        %v446 = vunpack.c.h.b16 %v263
        %v447 = vunpack.c.l.b16 %v264
        %v448 = vunpack.c.h.b16 %v264
        %v449 = vunpack.c.l.b16 %v265
        %v450 = vunpack.c.h.b16 %v265
        %v451 = vunpack.c.l.b16 %v266
        %v452 = vunpack.c.h.b16 %v266
        %v453 = vunpack.c.l.b16 %v267
        %v454 = vunpack.c.h.b16 %v267
        %v455 = vunpack.c.l.b16 %v268
        %v456 = vunpack.c.h.b16 %v268
        %v457 = vunpack.c.l.b16 %v269
        %v458 = vunpack.c.h.b16 %v269
        %v459 = vunpack.c.l.b16 %v270
        %v460 = vunpack.c.h.b16 %v270
        %v461 = vunpack.c.l.b16 %v271
        %v462 = vunpack.c.h.b16 %v271
        %v463 = vunpack.c.l.b16 %v272
        %v464 = vunpack.c.h.b16 %v272
        %v465 = vunpack.c.l.b16 %v273
        %v466 = vunpack.c.h.b16 %v273
        %v467 = vunpack.c.l.b16 %v274
        %v468 = vunpack.c.h.b16 %v274
        %v469 = vunpack.c.l.b16 %v275
        %v470 = vunpack.c.h.b16 %v275
        %v471 = vunpack.c.l.b16 %v276
        %v472 = vunpack.c.h.b16 %v276
        %v473 = vunpack.c.l.b16 %v277
        %v474 = vunpack.c.h.b16 %v277
        %v475 = vunpack.c.l.b16 %v278
        %v476 = vunpack.c.h.b16 %v278
        %v477 = vunpack.c.l.b16 %v279
        %v478 = vunpack.c.h.b16 %v279
        %v479 = vunpack.c.l.b16 %v280
        %v480 = vunpack.c.h.b16 %v280
        %v481 = vunpack.c.l.b16 %v281
        %v482 = vunpack.c.h.b16 %v281
        %v483 = vunpack.c.l.b16 %v282
        %v484 = vunpack.c.h.b16 %v282
        %v485 = vunpack.c.l.b16 %v283
        %v486 = vunpack.c.h.b16 %v283
        %v487 = vunpack.c.l.b16 %v284
        %v488 = vunpack.c.h.b16 %v284
        %v489 = vunpack.c.l.b16 %v285
        %v490 = vunpack.c.h.b16 %v285
        %v491 = vunpack.c.l.b16 %v286
        %v492 = vunpack.c.h.b16 %v286
        %v493 = vunpack.c.l.b16 %v287
        %v494 = vunpack.c.h.b16 %v287
        %v495 = vunpack.c.l.b16 %v288
        %v496 = vunpack.c.h.b16 %v288
        %v497 = vunpack.c.l.b16 %v289
        %v498 = vunpack.c.h.b16 %v289
        %v499 = vunpack.c.l.b16 %v290
        %v500 = vunpack.c.h.b16 %v290
        %v501 = vunpack.c.l.b16 %v291
        %v502 = vunpack.c.h.b16 %v291
        %v503 = vunpack.c.l.b16 %v292
        %v504 = vunpack.c.h.b16 %v292
        %v505 = vunpack.c.l.b16 %v293
        %v506 = vunpack.c.h.b16 %v293
        %v507 = vunpack.c.l.b16 %v294
        %v508 = vunpack.c.h.b16 %v294
        %v509 = vunpack.c.l.b16 %v295
        %v510 = vunpack.c.h.b16 %v295
        %v511 = vunpack.c.l.b16 %v296
        %v512 = vunpack.c.h.b16 %v296
        %v513 = vunpack.c.l.b16 %v297
        %v514 = vunpack.c.h.b16 %v297
        %v515 = vunpack.c.l.b16 %v298
        %v516 = vunpack.c.h.b16 %v298
        %v517 = vunpack.c.l.b16 %v299
        %v518 = vunpack.c.h.b16 %v299
        %v519 = vunpack.c.l.b16 %v300
        %v520 = vunpack.c.h.b16 %v300
        %v521 = vunpack.c.l.b16 %v301
        %v522 = vunpack.c.h.b16 %v301
        %v523 = vunpack.c.l.b16 %v302
        %v524 = vunpack.c.h.b16 %v302
        %v525 = vunpack.c.l.b16 %v303
        %v526 = vunpack.c.h.b16 %v303
        %v527 = vunpack.c.l.b16 %v304
        %v528 = vunpack.c.h.b16 %v304
        %v529 = vunpack.c.l.b16 %v305
        %v530 = vunpack.c.h.b16 %v305
        %v531 = vunpack.c.l.b16 %v306
        %v532 = vunpack.c.h.b16 %v306
        %v533 = vunpack.c.l.b16 %v307
        %v534 = vunpack.c.h.b16 %v307
        %v535 = vunpack.c.l.b16 %v308
        %v536 = vunpack.c.h.b16 %v308
        %v537 = vunpack.c.l.b16 %v309
        %v538 = vunpack.c.h.b16 %v309
        %v539 = vunpack.c.l.b16 %v310
        %v540 = vunpack.c.h.b16 %v310
        %v541 = vunpack.c.l.b16 %v311
        %v542 = vunpack.c.h.b16 %v311
        %v543 = vpack.c.b16 %v417, %v415
        %v544 = vpack.c.b16 %v418, %v416
        %v545 = vpack.c.b16 %v421, %v419
        %v546 = vpack.c.b16 %v422, %v420
        %v547 = vpack.c.b16 %v425, %v423
        %v548 = vpack.c.b16 %v426, %v424
        %v549 = vpack.c.b16 %v429, %v427
        %v550 = vpack.c.b16 %v430, %v428
        %v551 = vpack.c.b16 %v433, %v431
        %v552 = vpack.c.b16 %v434, %v432
        %v553 = vpack.c.b16 %v437, %v435
        %v554 = vpack.c.b16 %v438, %v436
        %v555 = vpack.c.b16 %v441, %v439
        %v556 = vpack.c.b16 %v442, %v440
        %v557 = vpack.c.b16 %v445, %v443
        %v558 = vpack.c.b16 %v446, %v444
        %v559 = vpack.c.b16 %v449, %v447
        %v560 = vpack.c.b16 %v450, %v448
        %v561 = vpack.c.b16 %v453, %v451
        %v562 = vpack.c.b16 %v454, %v452
        %v563 = vpack.c.b16 %v457, %v455
        %v564 = vpack.c.b16 %v458, %v456
        %v565 = vpack.c.b16 %v461, %v459
        %v566 = vpack.c.b16 %v462, %v460
        %v567 = vpack.c.b16 %v465, %v463
        %v568 = vpack.c.b16 %v466, %v464
        %v569 = vpack.c.b16 %v469, %v467
        %v570 = vpack.c.b16 %v470, %v468
        %v571 = vpack.c.b16 %v473, %v471
        %v572 = vpack.c.b16 %v474, %v472
        %v573 = vpack.c.b16 %v477, %v475
        %v574 = vpack.c.b16 %v478, %v476
        %v575 = vpack.c.b16 %v481, %v479
        %v576 = vpack.c.b16 %v482, %v480
        %v577 = vpack.c.b16 %v485, %v483
        %v578 = vpack.c.b16 %v486, %v484
        %v579 = vpack.c.b16 %v489, %v487
        %v580 = vpack.c.b16 %v490, %v488
        %v581 = vpack.c.b16 %v493, %v491
        %v582 = vpack.c.b16 %v494, %v492
        %v583 = vpack.c.b16 %v497, %v495
        %v584 = vpack.c.b16 %v498, %v496
        %v585 = vpack.c.b16 %v501, %v499
        %v586 = vpack.c.b16 %v502, %v500
        %v587 = vpack.c.b16 %v505, %v503
        %v588 = vpack.c.b16 %v506, %v504
        %v589 = vpack.c.b16 %v509, %v507
        %v590 = vpack.c.b16 %v510, %v508
        %v591 = vpack.c.b16 %v513, %v511
        %v592 = vpack.c.b16 %v514, %v512
        %v593 = vpack.c.b16 %v517, %v515
        %v594 = vpack.c.b16 %v518, %v516
        %v595 = vpack.c.b16 %v521, %v519
        %v596 = vpack.c.b16 %v522, %v520
        %v597 = vpack.c.b16 %v525, %v523
        %v598 = vpack.c.b16 %v526, %v524
        %v599 = vpack.c.b16 %v529, %v527
        %v600 = vpack.c.b16 %v530, %v528
        %v601 = vpack.c.b16 %v533, %v531
        %v602 = vpack.c.b16 %v534, %v532
        %v603 = vpack.c.b16 %v537, %v535
        %v604 = vpack.c.b16 %v538, %v536
        %v605 = vpack.c.b16 %v541, %v539
        %v606 = vpack.c.b16 %v542, %v540
        %v703 = vunpack.c.l.b16 %v312
        %v704 = vunpack.c.l.b16 %v313
        %v705 = vunpack.c.l.b16 %v314
        %v706 = vunpack.c.l.b16 %v315
        %v707 = vunpack.c.l.b16 %v316
        %v708 = vunpack.c.l.b16 %v317
        %v709 = vunpack.c.l.b16 %v318
        %v710 = vunpack.c.l.b16 %v319
        %v711 = vunpack.c.l.b16 %v320
        %v712 = vunpack.c.l.b16 %v321
        %v713 = vunpack.c.l.b16 %v322
        %v714 = vunpack.c.l.b16 %v323
        %v715 = vunpack.c.l.b16 %v324
        %v716 = vunpack.c.l.b16 %v325
        %v717 = vunpack.c.l.b16 %v326
        %v718 = vunpack.c.l.b16 %v327
        %v719 = vunpack.c.l.b16 %v328
        %v720 = vunpack.c.l.b16 %v329
        %v721 = vunpack.c.l.b16 %v330
        %v722 = vunpack.c.l.b16 %v331
        %v723 = vunpack.c.l.b16 %v332
        %v724 = vunpack.c.l.b16 %v333
        %v725 = vunpack.c.l.b16 %v334
        %v726 = vunpack.c.l.b16 %v335
        %v727 = vunpack.c.l.b16 %v336
        %v728 = vunpack.c.l.b16 %v337
        %v729 = vunpack.c.l.b16 %v338
        %v730 = vunpack.c.l.b16 %v339
        %v731 = vunpack.c.l.b16 %v340
        %v732 = vunpack.c.l.b16 %v341
        %v733 = vunpack.c.l.b16 %v342
        %v734 = vunpack.c.l.b16 %v343
        %v735 = vpack.c.b16 %v704, %v703
        %v736 = vpack.c.b16 %v706, %v705
        %v737 = vpack.c.b16 %v708, %v707
        %v738 = vpack.c.b16 %v710, %v709
        %v739 = vpack.c.b16 %v712, %v711
        %v740 = vpack.c.b16 %v714, %v713
        %v741 = vpack.c.b16 %v716, %v715
        %v742 = vpack.c.b16 %v718, %v717
        %v743 = vpack.c.b16 %v720, %v719
        %v744 = vpack.c.b16 %v722, %v721
        %v745 = vpack.c.b16 %v724, %v723
        %v746 = vpack.c.b16 %v726, %v725
        %v747 = vpack.c.b16 %v728, %v727
        %v748 = vpack.c.b16 %v730, %v729
        %v749 = vpack.c.b16 %v732, %v731
        %v750 = vpack.c.b16 %v734, %v733
        %767 = vmatprep.subr.bf16.mxu0 0
        %768 = vmatpush1.bf16.msra.mxu0 %v735
        %769 = vmatprep.subr.bf16.mxu0 0
        %770 = vmatpush1.bf16.msra.mxu0 %v736
        %771 = vmatprep.subr.bf16.mxu0 0
        %772 = vmatpush1.bf16.msra.mxu0 %v737
        %773 = vmatprep.subr.bf16.mxu0 0
        %774 = vmatpush1.bf16.msra.mxu0 %v738
        %775 = vmatprep.subr.bf16.mxu0 0
        %776 = vmatpush1.bf16.msra.mxu0 %v739
        %777 = vmatprep.subr.bf16.mxu0 0
        %778 = vmatpush1.bf16.msra.mxu0 %v740
        %779 = vmatprep.subr.bf16.mxu0 0
        %780 = vmatpush1.bf16.msra.mxu0 %v741
        %781 = vmatprep.subr.bf16.mxu0 0
        %782 = vmatpush1.bf16.msra.mxu0 %v742
        %783 = vmatprep.subr.bf16.mxu0 0
        %784 = vmatpush1.bf16.msra.mxu0 %v743
        %785 = vmatprep.subr.bf16.mxu0 0
        %786 = vmatpush1.bf16.msra.mxu0 %v744
        %787 = vmatprep.subr.bf16.mxu0 0
        %788 = vmatpush1.bf16.msra.mxu0 %v745
        %789 = vmatprep.subr.bf16.mxu0 0
        %790 = vmatpush1.bf16.msra.mxu0 %v746
        %791 = vmatprep.subr.bf16.mxu0 0
        %792 = vmatpush1.bf16.msra.mxu0 %v747
        %793 = vmatprep.subr.bf16.mxu0 0
        %794 = vmatpush1.bf16.msra.mxu0 %v748
        %795 = vmatprep.subr.bf16.mxu0 0
        %796 = vmatpush1.bf16.msra.mxu0 %v749
        %797 = vmatprep.subr.bf16.mxu0 0
        %798 = vmatpush1.bf16.msra.mxu0 %v750
        %799 = vmatprep.mubr.bf16.mxu0 %v544
        %800 = vmatmul.mubr.bf16.gmra.mrb[0].mxu0 %v543
        %v801 = vpop.f32.mrb[0].mxu0
        %v802 = vadd.f32 %v349, %v801
        %v803 = vpop.f32.mrb[0].mxu0
        %v804 = vpop.f32.mrb[0].mxu0
        %v805 = vadd.f32 %v349, %v804
        %v806 = vpop.f32.mrb[0].mxu0
        %807 = vmatprep.mubr.bf16.mxu0 %v546
        %808 = vmatmul.mubr.bf16.gmra.mrb[0].mxu0 %v545
        %v809 = vpop.f32.mrb[0].mxu0
        %v810 = vadd.f32 %v349, %v809
        %v811 = vpop.f32.mrb[0].mxu0
        %v812 = vpop.f32.mrb[0].mxu0
        %v813 = vadd.f32 %v349, %v812
        %v814 = vpop.f32.mrb[0].mxu0
        %815 = vmatprep.mubr.bf16.mxu0 %v548
        %816 = vmatmul.mubr.bf16.gmra.mrb[0].mxu0 %v547
        %v817 = vpop.f32.mrb[0].mxu0
        %v818 = vadd.f32 %v349, %v817
        %v819 = vpop.f32.mrb[0].mxu0
        %v820 = vpop.f32.mrb[0].mxu0
        %v821 = vadd.f32 %v349, %v820
        %v822 = vpop.f32.mrb[0].mxu0
        %823 = vmatprep.mubr.bf16.mxu0 %v550
        %824 = vmatmul.mubr.bf16.gmra.mrb[0].mxu0 %v549
        %v825 = vpop.f32.mrb[0].mxu0
        %v826 = vadd.f32 %v349, %v825
        %v827 = vpop.f32.mrb[0].mxu0
        %v828 = vpop.f32.mrb[0].mxu0
        %v829 = vadd.f32 %v349, %v828
        %v830 = vpop.f32.mrb[0].mxu0
        %831 = vmatprep.mubr.bf16.mxu0 %v552
        %832 = vmatmul.mubr.bf16.gmra.mrb[0].mxu0 %v551
        %v833 = vpop.f32.mrb[0].mxu0
        %v834 = vadd.f32 %v349, %v833
        %v835 = vpop.f32.mrb[0].mxu0
        %v836 = vpop.f32.mrb[0].mxu0
        %v837 = vadd.f32 %v349, %v836
        %v838 = vpop.f32.mrb[0].mxu0
        %839 = vmatprep.mubr.bf16.mxu0 %v554
        %840 = vmatmul.mubr.bf16.gmra.mrb[0].mxu0 %v553
        %v841 = vpop.f32.mrb[0].mxu0
        %v842 = vadd.f32 %v349, %v841
        %v843 = vpop.f32.mrb[0].mxu0
        %v844 = vpop.f32.mrb[0].mxu0
        %v845 = vadd.f32 %v349, %v844
        %v846 = vpop.f32.mrb[0].mxu0
        %847 = vmatprep.mubr.bf16.mxu0 %v556
        %848 = vmatmul.mubr.bf16.gmra.mrb[0].mxu0 %v555
        %v849 = vpop.f32.mrb[0].mxu0
        %v850 = vadd.f32 %v349, %v849
        %v851 = vpop.f32.mrb[0].mxu0
        %v852 = vpop.f32.mrb[0].mxu0
        %v853 = vadd.f32 %v349, %v852
        %v854 = vpop.f32.mrb[0].mxu0
        %855 = vmatprep.mubr.bf16.mxu0 %v558
        %856 = vmatmul.mubr.bf16.gmra.mrb[0].mxu0 %v557
        %v857 = vpop.f32.mrb[0].mxu0
        %v858 = vadd.f32 %v349, %v857
        %v859 = vpop.f32.mrb[0].mxu0
        %v860 = vpop.f32.mrb[0].mxu0
        %v861 = vadd.f32 %v349, %v860
        %v862 = vpop.f32.mrb[0].mxu0
        %863 = vmatprep.mubr.bf16.mxu0 %v560
        %864 = vmatmul.mubr.bf16.gmra.mrb[0].mxu0 %v559
        %v865 = vpop.f32.mrb[0].mxu0
        %v866 = vadd.f32 %v349, %v865
        %v867 = vpop.f32.mrb[0].mxu0
        %v868 = vpop.f32.mrb[0].mxu0
        %v869 = vadd.f32 %v349, %v868
        %v870 = vpop.f32.mrb[0].mxu0
        %871 = vmatprep.mubr.bf16.mxu0 %v562
        %872 = vmatmul.mubr.bf16.gmra.mrb[0].mxu0 %v561
        %v873 = vpop.f32.mrb[0].mxu0
        %v874 = vadd.f32 %v349, %v873
        %v875 = vpop.f32.mrb[0].mxu0
        %v876 = vpop.f32.mrb[0].mxu0
        %v877 = vadd.f32 %v349, %v876
        %v878 = vpop.f32.mrb[0].mxu0
        %879 = vmatprep.mubr.bf16.mxu0 %v564
        %880 = vmatmul.mubr.bf16.gmra.mrb[0].mxu0 %v563
        %v881 = vpop.f32.mrb[0].mxu0
        %v882 = vadd.f32 %v349, %v881
        %v883 = vpop.f32.mrb[0].mxu0
        %v884 = vpop.f32.mrb[0].mxu0
        %v885 = vadd.f32 %v349, %v884
        %v886 = vpop.f32.mrb[0].mxu0
        %887 = vmatprep.mubr.bf16.mxu0 %v566
        %888 = vmatmul.mubr.bf16.gmra.mrb[0].mxu0 %v565
        %v889 = vpop.f32.mrb[0].mxu0
        %v890 = vadd.f32 %v349, %v889
        %v891 = vpop.f32.mrb[0].mxu0
        %v892 = vpop.f32.mrb[0].mxu0
        %v893 = vadd.f32 %v349, %v892
        %v894 = vpop.f32.mrb[0].mxu0
        %895 = vmatprep.mubr.bf16.mxu0 %v568
        %896 = vmatmul.mubr.bf16.gmra.mrb[0].mxu0 %v567
        %v897 = vpop.f32.mrb[0].mxu0
        %v898 = vadd.f32 %v349, %v897
        %v899 = vpop.f32.mrb[0].mxu0
        %v900 = vpop.f32.mrb[0].mxu0
        %v901 = vadd.f32 %v349, %v900
        %v902 = vpop.f32.mrb[0].mxu0
        %903 = vmatprep.mubr.bf16.mxu0 %v570
        %904 = vmatmul.mubr.bf16.gmra.mrb[0].mxu0 %v569
        %v905 = vpop.f32.mrb[0].mxu0
        %v906 = vadd.f32 %v349, %v905
        %v907 = vpop.f32.mrb[0].mxu0
        %v908 = vpop.f32.mrb[0].mxu0
        %v909 = vadd.f32 %v349, %v908
        %v910 = vpop.f32.mrb[0].mxu0
        %911 = vmatprep.mubr.bf16.mxu0 %v572
        %912 = vmatmul.mubr.bf16.gmra.mrb[0].mxu0 %v571
        %v913 = vpop.f32.mrb[0].mxu0
        %v914 = vadd.f32 %v349, %v913
        %v915 = vpop.f32.mrb[0].mxu0
        %v916 = vpop.f32.mrb[0].mxu0
        %v917 = vadd.f32 %v349, %v916
        %v918 = vpop.f32.mrb[0].mxu0
        %919 = vmatprep.mubr.bf16.mxu0 %v574
        %920 = vmatmul.mubr.bf16.gmra.mrb[0].mxu0 %v573
        %v921 = vpop.f32.mrb[0].mxu0
        %v922 = vadd.f32 %v349, %v921
        %v923 = vpop.f32.mrb[0].mxu0
        %v924 = vpop.f32.mrb[0].mxu0
        %v925 = vadd.f32 %v349, %v924
        %v926 = vpop.f32.mrb[0].mxu0
        %927 = vmatprep.mubr.bf16.mxu0 %v576
        %928 = vmatmul.mubr.bf16.gmra.mrb[0].mxu0 %v575
        %v929 = vpop.f32.mrb[0].mxu0
        %v930 = vadd.f32 %v349, %v929
        %v931 = vpop.f32.mrb[0].mxu0
        %v932 = vpop.f32.mrb[0].mxu0
        %v933 = vadd.f32 %v349, %v932
        %v934 = vpop.f32.mrb[0].mxu0
        %935 = vmatprep.mubr.bf16.mxu0 %v578
        %936 = vmatmul.mubr.bf16.gmra.mrb[0].mxu0 %v577
        %v937 = vpop.f32.mrb[0].mxu0
        %v938 = vadd.f32 %v349, %v937
        %v939 = vpop.f32.mrb[0].mxu0
        %v940 = vpop.f32.mrb[0].mxu0
        %v941 = vadd.f32 %v349, %v940
        %v942 = vpop.f32.mrb[0].mxu0
        %943 = vmatprep.mubr.bf16.mxu0 %v580
        %944 = vmatmul.mubr.bf16.gmra.mrb[0].mxu0 %v579
        %v945 = vpop.f32.mrb[0].mxu0
        %v946 = vadd.f32 %v349, %v945
        %v947 = vpop.f32.mrb[0].mxu0
        %v948 = vpop.f32.mrb[0].mxu0
        %v949 = vadd.f32 %v349, %v948
        %v950 = vpop.f32.mrb[0].mxu0
        %951 = vmatprep.mubr.bf16.mxu0 %v582
        %952 = vmatmul.mubr.bf16.gmra.mrb[0].mxu0 %v581
        %v953 = vpop.f32.mrb[0].mxu0
        %v954 = vadd.f32 %v349, %v953
        %v955 = vpop.f32.mrb[0].mxu0
        %v956 = vpop.f32.mrb[0].mxu0
        %v957 = vadd.f32 %v349, %v956
        %v958 = vpop.f32.mrb[0].mxu0
        %959 = vmatprep.mubr.bf16.mxu0 %v584
        %960 = vmatmul.mubr.bf16.gmra.mrb[0].mxu0 %v583
        %v961 = vpop.f32.mrb[0].mxu0
        %v962 = vadd.f32 %v349, %v961
        %v963 = vpop.f32.mrb[0].mxu0
        %v964 = vpop.f32.mrb[0].mxu0
        %v965 = vadd.f32 %v349, %v964
        %v966 = vpop.f32.mrb[0].mxu0
        %967 = vmatprep.mubr.bf16.mxu0 %v586
        %968 = vmatmul.mubr.bf16.gmra.mrb[0].mxu0 %v585
        %v969 = vpop.f32.mrb[0].mxu0
        %v970 = vadd.f32 %v349, %v969
        %v971 = vpop.f32.mrb[0].mxu0
        %v972 = vpop.f32.mrb[0].mxu0
        %v973 = vadd.f32 %v349, %v972
        %v974 = vpop.f32.mrb[0].mxu0
        %975 = vmatprep.mubr.bf16.mxu0 %v588
        %976 = vmatmul.mubr.bf16.gmra.mrb[0].mxu0 %v587
        %v977 = vpop.f32.mrb[0].mxu0
        %v978 = vadd.f32 %v349, %v977
        %v979 = vpop.f32.mrb[0].mxu0
        %v980 = vpop.f32.mrb[0].mxu0
        %v981 = vadd.f32 %v349, %v980
        %v982 = vpop.f32.mrb[0].mxu0
        %983 = vmatprep.mubr.bf16.mxu0 %v590
        %984 = vmatmul.mubr.bf16.gmra.mrb[0].mxu0 %v589
        %v985 = vpop.f32.mrb[0].mxu0
        %v986 = vadd.f32 %v349, %v985
        %v987 = vpop.f32.mrb[0].mxu0
        %v988 = vpop.f32.mrb[0].mxu0
        %v989 = vadd.f32 %v349, %v988
        %v990 = vpop.f32.mrb[0].mxu0
        %991 = vmatprep.mubr.bf16.mxu0 %v592
        %992 = vmatmul.mubr.bf16.gmra.mrb[0].mxu0 %v591
        %v993 = vpop.f32.mrb[0].mxu0
        %v994 = vadd.f32 %v349, %v993
        %v995 = vpop.f32.mrb[0].mxu0
        %v996 = vpop.f32.mrb[0].mxu0
        %v997 = vadd.f32 %v349, %v996
        %v998 = vpop.f32.mrb[0].mxu0
        %999 = vmatprep.mubr.bf16.mxu0 %v594
        %1000 = vmatmul.mubr.bf16.gmra.mrb[0].mxu0 %v593
        %v1001 = vpop.f32.mrb[0].mxu0
        %v1002 = vadd.f32 %v349, %v1001
        %v1003 = vpop.f32.mrb[0].mxu0
        %v1004 = vpop.f32.mrb[0].mxu0
        %v1005 = vadd.f32 %v349, %v1004
        %v1006 = vpop.f32.mrb[0].mxu0
        %1007 = vmatprep.mubr.bf16.mxu0 %v596
        %1008 = vmatmul.mubr.bf16.gmra.mrb[0].mxu0 %v595
        %v1009 = vpop.f32.mrb[0].mxu0
        %v1010 = vadd.f32 %v349, %v1009
        %v1011 = vpop.f32.mrb[0].mxu0
        %v1012 = vpop.f32.mrb[0].mxu0
        %v1013 = vadd.f32 %v349, %v1012
        %v1014 = vpop.f32.mrb[0].mxu0
        %1015 = vmatprep.mubr.bf16.mxu0 %v598
        %1016 = vmatmul.mubr.bf16.gmra.mrb[0].mxu0 %v597
        %v1017 = vpop.f32.mrb[0].mxu0
        %v1018 = vadd.f32 %v349, %v1017
        %v1019 = vpop.f32.mrb[0].mxu0
        %v1020 = vpop.f32.mrb[0].mxu0
        %v1021 = vadd.f32 %v349, %v1020
        %v1022 = vpop.f32.mrb[0].mxu0
        %1023 = vmatprep.mubr.bf16.mxu0 %v600
        %1024 = vmatmul.mubr.bf16.gmra.mrb[0].mxu0 %v599
        %v1025 = vpop.f32.mrb[0].mxu0
        %v1026 = vadd.f32 %v349, %v1025
        %v1027 = vpop.f32.mrb[0].mxu0
        %v1028 = vpop.f32.mrb[0].mxu0
        %v1029 = vadd.f32 %v349, %v1028
        %v1030 = vpop.f32.mrb[0].mxu0
        %1031 = vmatprep.mubr.bf16.mxu0 %v602
        %1032 = vmatmul.mubr.bf16.gmra.mrb[0].mxu0 %v601
        %v1033 = vpop.f32.mrb[0].mxu0
        %v1034 = vadd.f32 %v349, %v1033
        %v1035 = vpop.f32.mrb[0].mxu0
        %v1036 = vpop.f32.mrb[0].mxu0
        %v1037 = vadd.f32 %v349, %v1036
        %v1038 = vpop.f32.mrb[0].mxu0
        %1039 = vmatprep.mubr.bf16.mxu0 %v604
        %1040 = vmatmul.mubr.bf16.gmra.mrb[0].mxu0 %v603
        %v1041 = vpop.f32.mrb[0].mxu0
        %v1042 = vadd.f32 %v349, %v1041
        %v1043 = vpop.f32.mrb[0].mxu0
        %v1044 = vpop.f32.mrb[0].mxu0
        %v1045 = vadd.f32 %v349, %v1044
        %v1046 = vpop.f32.mrb[0].mxu0
        %1047 = vmatprep.mubr.bf16.mxu0 %v606
        %1048 = vmatmul.mubr.bf16.gmra.mrb[0].mxu0 %v605
        %v1049 = vpop.f32.mrb[0].mxu0
        %v1050 = vadd.f32 %v349, %v1049
        %v1051 = vpop.f32.mrb[0].mxu0
        %v1052 = vpop.f32.mrb[0].mxu0
        %v1053 = vadd.f32 %v349, %v1052
        %v1054 = vpop.f32.mrb[0].mxu0
        %1055 = vdwg.mxu0
        %1056 = vst [vmem:[%s244] sm:$0xff] %v802
        %1057 = vst [vmem:[%s244 + $0x8] sm:$0xff] %v805
        %1058 = vst [vmem:[%s244 + $0x10] sm:$0xff] %v810
        %1059 = vst [vmem:[%s244 + $0x18] sm:$0xff] %v813
        %1060 = vst [vmem:[%s244 + $0x20] sm:$0xff] %v818
        %1061 = vst [vmem:[%s244 + $0x28] sm:$0xff] %v821
        %1062 = vst [vmem:[%s244 + $0x30] sm:$0xff] %v826
        %1063 = vst [vmem:[%s244 + $0x38] sm:$0xff] %v829
        %1064 = vst [vmem:[%s244 + $0x40] sm:$0xff] %v834
        %1065 = vst [vmem:[%s244 + $0x48] sm:$0xff] %v837
        %1066 = vst [vmem:[%s244 + $0x50] sm:$0xff] %v842
        %1067 = vst [vmem:[%s244 + $0x58] sm:$0xff] %v845
        %1068 = vst [vmem:[%s244 + $0x60] sm:$0xff] %v850
        %1069 = vst [vmem:[%s244 + $0x68] sm:$0xff] %v853
        %1070 = vst [vmem:[%s244 + $0x70] sm:$0xff] %v858
        %1071 = vst [vmem:[%s244 + $0x78] sm:$0xff] %v861
        %1072 = vst [vmem:[%s244 + $0x80] sm:$0xff] %v866
        %1073 = vst [vmem:[%s244 + $0x88] sm:$0xff] %v869
        %1074 = vst [vmem:[%s244 + $0x90] sm:$0xff] %v874
        %1075 = vst [vmem:[%s244 + $0x98] sm:$0xff] %v877
        %1076 = vst [vmem:[%s244 + $0xa0] sm:$0xff] %v882
        %1077 = vst [vmem:[%s244 + $0xa8] sm:$0xff] %v885
        %1078 = vst [vmem:[%s244 + $0xb0] sm:$0xff] %v890
        %1079 = vst [vmem:[%s244 + $0xb8] sm:$0xff] %v893
        %1080 = vst [vmem:[%s244 + $0xc0] sm:$0xff] %v898
        %1081 = vst [vmem:[%s244 + $0xc8] sm:$0xff] %v901
        %1082 = vst [vmem:[%s244 + $0xd0] sm:$0xff] %v906
        %1083 = vst [vmem:[%s244 + $0xd8] sm:$0xff] %v909
        %1084 = vst [vmem:[%s244 + $0xe0] sm:$0xff] %v914
        %1085 = vst [vmem:[%s244 + $0xe8] sm:$0xff] %v917
        %1086 = vst [vmem:[%s244 + $0xf0] sm:$0xff] %v922
        %1087 = vst [vmem:[%s244 + $0xf8] sm:$0xff] %v925
        %1088 = vst [vmem:[%s244 + $0x100] sm:$0xff] %v930
        %1089 = vst [vmem:[%s244 + $0x108] sm:$0xff] %v933
        %1090 = vst [vmem:[%s244 + $0x110] sm:$0xff] %v938
        %1091 = vst [vmem:[%s244 + $0x118] sm:$0xff] %v941
        %1092 = vst [vmem:[%s244 + $0x120] sm:$0xff] %v946
        %1093 = vst [vmem:[%s244 + $0x128] sm:$0xff] %v949
        %1094 = vst [vmem:[%s244 + $0x130] sm:$0xff] %v954
        %1095 = vst [vmem:[%s244 + $0x138] sm:$0xff] %v957
        %1096 = vst [vmem:[%s244 + $0x140] sm:$0xff] %v962
        %1097 = vst [vmem:[%s244 + $0x148] sm:$0xff] %v965
        %1098 = vst [vmem:[%s244 + $0x150] sm:$0xff] %v970
        %1099 = vst [vmem:[%s244 + $0x158] sm:$0xff] %v973
        %1100 = vst [vmem:[%s244 + $0x160] sm:$0xff] %v978
        %1101 = vst [vmem:[%s244 + $0x168] sm:$0xff] %v981
        %1102 = vst [vmem:[%s244 + $0x170] sm:$0xff] %v986
        %1103 = vst [vmem:[%s244 + $0x178] sm:$0xff] %v989
        %1104 = vst [vmem:[%s244 + $0x180] sm:$0xff] %v994
        %1105 = vst [vmem:[%s244 + $0x188] sm:$0xff] %v997
        %1106 = vst [vmem:[%s244 + $0x190] sm:$0xff] %v1002
        %1107 = vst [vmem:[%s244 + $0x198] sm:$0xff] %v1005
        %1108 = vst [vmem:[%s244 + $0x1a0] sm:$0xff] %v1010
        %1109 = vst [vmem:[%s244 + $0x1a8] sm:$0xff] %v1013
        %1110 = vst [vmem:[%s244 + $0x1b0] sm:$0xff] %v1018
        %1111 = vst [vmem:[%s244 + $0x1b8] sm:$0xff] %v1021
        %1112 = vst [vmem:[%s244 + $0x1c0] sm:$0xff] %v1026
        %1113 = vst [vmem:[%s244 + $0x1c8] sm:$0xff] %v1029
        %1114 = vst [vmem:[%s244 + $0x1d0] sm:$0xff] %v1034
        %1115 = vst [vmem:[%s244 + $0x1d8] sm:$0xff] %v1037
        %1116 = vst [vmem:[%s244 + $0x1e0] sm:$0xff] %v1042
        %1117 = vst [vmem:[%s244 + $0x1e8] sm:$0xff] %v1045
        %1118 = vst [vmem:[%s244 + $0x1f0] sm:$0xff] %v1050
        %1119 = vst [vmem:[%s244 + $0x1f8] sm:$0xff] %v1053
        %s1120 = sand.u32 %s121, 1
        %s1121 = scalar_lea.sflag [#allocation4], %s1120
        %s1122 = sand.u32 %s121, 1
        %s1123 = smul.addr %s1122, 512
        %s1124 = scalar_lea.vmem [#allocation8], %s1123
        // Predicated region
        $region45: #{tpu_custom_call.1} parent=31 // pred_check
          %p1125 = pneg %p131
        $region46: #{tpu_custom_call.1} parent=31 // pred_check_branch
          %1127 = sbr.rel (%p1125) target = $region48
        $region47: #{tpu_custom_call.1} parent=31 // pred_region
          %s1128 = smul.u32 64, %s25
          %s1130 = ssub.s32 8192, 8192
          %1131 = vsyncadd %s1121, %s1130
          %s1132 = sadd.s32 %s26, %s1128
          %s1133 = smul.addr %s1132, 128
          %s1134 = scalar_lea.hbm %s3, %s1133
          %s1135 = sshll.u32 %s1124, 4
          %s1136 = int_to_ptr.vmem [resolvable:$true] %s1135
          %1141 = dma.vmem_to_hbm [thread:$0]  %s1136, 8192, %s1134, %s1121, 128, 128, 8
        $region48: #{tpu_custom_call.1} parent=31 // pred_fallthru
          _
      $region32: #{tpu_custom_call.1} parent=5 // pred_fallthru
        _
      %p1142 = scmp.le.s32.totalorder 2, %s16
      // Predicated region
      $region49: #{tpu_custom_call.1} parent=5 // pred_check
        %p1143 = pneg %p1142
      $region50: #{tpu_custom_call.1} parent=5 // pred_check_branch
        %1145 = sbr.rel (%p1143) target = $region52
      $region51: #{tpu_custom_call.1} parent=5 // pred_region
        %s1146 = ssub.s32 %s16, 2
        // Predicated region
        $region53: #{tpu_custom_call.1} parent=51 // pred_check
          %p1147 = pneg %p137
        $region54: #{tpu_custom_call.1} parent=51 // pred_check_branch
          %1149 = sbr.rel (%p1147) target = $region56
        $region55: #{tpu_custom_call.1} parent=51 // pred_region
          %s1150 = sand.u32 %s122, 1
          %s1151 = scalar_lea.sflag [#allocation4], %s1150
          %s1152 = sand.u32 %s122, 1
          %s1153 = smul.addr %s1152, 512
          %s1154 = scalar_lea.vmem [#allocation8], %s1153
          %1155 = dma.done %s1151, 8192
        $region56: #{tpu_custom_call.1} parent=51 // pred_fallthru
          _
      $region52: #{tpu_custom_call.1} parent=5 // pred_fallthru
        _
    $region6: #{tpu_custom_call.1} parent=1 // loop_footer
      %s20 = sadd.s32 1, %s16
    $region7: #{tpu_custom_call.1} parent=1 // loop_footer_branch
      %15 = sbr.rel target = $region3
    $region8: #{tpu_custom_call.1} parent=1 // loop_exit
      _
    %1156 = vsyncpa [#allocation3], 1
    %s1157 = scalar_lea.sflag [#allocation3], 1
    %1158 = vsyncpa %s1157, 1
    %1159 = vsyncpa [#allocation6], 1
    %1160 = vsyncpa [#allocation4], 1
    %s1161 = scalar_lea.sflag [#allocation4], 1
    %1162 = vsyncpa %s1161, 1

</llo_original>
